<compile_context>
chip_gen: v7x
topology: tpu7x:2x2x1
jax: 0.10.0
libtpu: 0.0.40
codegen_flags: <defaults>
</compile_context>

<pallas_src>
import functools

import jax
import jax.numpy as jnp
from jax import lax
from jax.experimental import pallas as pl
from jax.experimental.pallas import tpu as pltpu

_EPS2 = 1e-24  # (torch.nn.functional.normalize eps = 1e-12) ** 2


def _round_up(a: int, b: int) -> int:
    return ((a + b - 1) // b) * b


def _cdiv(a: int, b: int) -> int:
    return -(-a // b)


def _vmem_limit_bytes() -> int:
    # Generation-aware scoped-VMEM budget: ~48 MiB on v7x (64 MiB physical),
    # 64 MiB on v5e/v6e (128 MiB physical); conservative fallback otherwise.
    try:
        cap = pltpu.get_tpu_info().vmem_capacity_bytes
    except Exception:  # pragma: no cover - query unavailable
        cap = 64 * 1024 * 1024
    return max(32 * 1024 * 1024, min(cap - 16 * 1024 * 1024, 64 * 1024 * 1024))


def _face_recog_fc_kernel(x_ref, w_ref, out_ref, *, num_classes, tile_n,
                          mask_ragged):
    """x_ref: (TM, D) pre-normalized; w_ref: (TN, D) raw W; out_ref: (TM, TN)."""
    w = w_ref[...].astype(jnp.float32)

    if mask_ragged:
        # Last class tile reads past the end of W (undefined contents): zero
        # those rows before they reach the norm / MXU.  Compile-time no-op
        # when C % TN == 0.
        cls = (pl.program_id(0) * tile_n
               + lax.broadcasted_iota(jnp.int32, w.shape, 0))
        w = jnp.where(cls < num_classes, w, 0.0)

    # Row-wise L2 normalization of the weight tile (one rsqrt + mul per row).
    sumsq = jnp.sum(w * w, axis=-1, keepdims=True)
    wn = w * lax.rsqrt(jnp.maximum(sumsq, jnp.float32(_EPS2)))

    # (TM, D) x (TN, D) -> (TM, TN): contract on D, f32 accumulation on MXU.
    logits = lax.dot_general(
        x_ref[...], wn.astype(x_ref.dtype),
        dimension_numbers=(((1,), (1,)), ((), ())),
        preferred_element_type=jnp.float32)

    out_ref[...] = jnp.clip(logits, -1.0, 1.0).astype(out_ref.dtype)


@functools.partial(jax.jit, static_argnames=("tile_m", "tile_n", "mxu_dtype"))
def face_recog_fc(x, weight, *, tile_m: int = 128, tile_n: int = 2048,
                  mxu_dtype=jnp.float32):
    """x: (B, D), weight: (C, D) -> (B, C) float32 cosine logits in [-1, 1]."""
    B, D = x.shape
    C, Dw = weight.shape
    assert D == Dw, "embedding dims must match"

    # --- hoisted x prep: normalize the tiny (B, D) batch once, in f32 -------
    xf = x.astype(jnp.float32)
    x_sumsq = jnp.sum(xf * xf, axis=1, keepdims=True)
    xn = xf * lax.rsqrt(jnp.maximum(x_sumsq, jnp.float32(_EPS2)))

    # --- tile sizing ---------------------------------------------------------
    tm = _round_up(min(tile_m, _round_up(B, 8)), 8)
    tn = _round_up(min(tile_n, _round_up(C, 128)), 128)
    grid_b = _cdiv(B, tm)
    grid_c = _cdiv(C, tn)
    # v7x megacore: keep >= 2 grid steps so the 2 TensorCores both get work.
    if grid_b * grid_c == 1 and C > 256:
        tn = _round_up(_cdiv(C, 2), 128)
        grid_c = _cdiv(C, tn)
    b_pad, c_pad = grid_b * tm, grid_c * tn

    w_in = weight
    mask_ragged = (C % tn) != 0
    if tn > C:
        # Tiny class count: pad the (small) weight once so the single class
        # block stays in-bounds; zero rows give zero logits, sliced off below.
        w_in = jnp.pad(weight, ((0, tn - C), (0, 0)))
        mask_ragged = False

    xn = xn.astype(mxu_dtype)
    if b_pad != B:
        xn = jnp.pad(xn, ((0, b_pad - B), (0, 0)))  # zero rows -> zero logits

    kernel = functools.partial(_face_recog_fc_kernel, num_classes=C,
                               tile_n=tn, mask_ragged=mask_ragged)

    cost = pl.CostEstimate(
        flops=2 * b_pad * c_pad * D,
        transcendentals=c_pad,  # one rsqrt per class row
        bytes_accessed=(C * D * weight.dtype.itemsize
                        + b_pad * D * 4 + b_pad * c_pad * 4),
    )

    out = pl.pallas_call(
        kernel,
        out_shape=jax.ShapeDtypeStruct((b_pad, c_pad), jnp.float32),
        grid_spec=pltpu.PrefetchScalarGridSpec(
            num_scalar_prefetch=0,
            # Class tiles outer, batch tiles inner: W block index is constant
            # across the inner sweep, so W streams from HBM exactly once.
            grid=(grid_c, grid_b),
            in_specs=[
                pl.BlockSpec((tm, D), lambda j, i: (i, 0)),
                pl.BlockSpec((tn, D), lambda j, i: (j, 0)),
            ],
            out_specs=pl.BlockSpec((tm, tn), lambda j, i: (i, j)),
        ),
        compiler_params=pltpu.CompilerParams(
            dimension_semantics=("parallel", "parallel"),
            vmem_limit_bytes=_vmem_limit_bytes(),
        ),
        cost_estimate=cost,
    )(xn, w_in)

    return out[:B, :C]


if __name__ == "__main__":
    key = jax.random.PRNGKey(0)
    kx, kw = jax.random.split(key)

    batch = 8
    embedding_size = 512   # the torch forward hard-codes 512 for the weight
    num_classes = 384      # small, but forces a 2-tile, ragged class grid

    x = jax.random.normal(kx, (batch, embedding_size), dtype=jnp.float32)
    # Deterministic stand-in for torch.normal(0, 0.01, (num_classes, 512)).
    weight = 0.01 * jax.random.normal(
        kw, (num_classes, embedding_size), dtype=jnp.float32)

    # Pure-JAX reference.
    xn_ref = x / jnp.maximum(jnp.linalg.norm(x, axis=1, keepdims=True), 1e-12)
    wn_ref = weight / jnp.maximum(
        jnp.linalg.norm(weight, axis=1, keepdims=True), 1e-12)
    ref = jnp.clip(xn_ref @ wn_ref.T, -1.0, 1.0)

    # fp32 MXU path (matches reference to 1e-5).
    logits = face_recog_fc(x, weight)
    jax.block_until_ready(logits)
    assert logits.shape == ref.shape
    assert jnp.max(jnp.abs(logits - ref)) < 1e-5

    # bf16 MXU-operand path (f32 normalization / accumulation / clip).
    logits_bf16 = face_recog_fc(x, weight, mxu_dtype=jnp.bfloat16)
    jax.block_until_ready(logits_bf16)
    assert jnp.max(jnp.abs(logits_bf16 - ref)) < 2e-2

    print("KERNEL_OK")
</pallas_src>

<mosaic_0001>
module attributes {stable_mosaic.version = 11 : i64} {
  func.func @_face_recog_fc_kernel(%arg0: i32, %arg1: i32, %arg2: memref<8x512xf32, #tpu.memory_space<vmem>>, %arg3: memref<256x512xf32, #tpu.memory_space<vmem>>, %arg4: memref<8x256xf32, #tpu.memory_space<vmem>>) attributes {dimension_semantics = [#tpu.dimension_semantics<parallel>, #tpu.dimension_semantics<parallel>], iteration_bounds = array<i64: 2, 1>, scalar_prefetch = 0 : i64, scratch_operands = 0 : i64, tpu.core_type = #tpu.core_type<tc>, window_params = [{transform_indices = @transform_0, window_bounds = array<i64: 8, 512>}, {transform_indices = @transform_1, window_bounds = array<i64: 256, 512>}, {transform_indices = @transform_2, window_bounds = array<i64: 8, 256>}]} {
    %c0 = arith.constant 0 : index
    %c0_0 = arith.constant 0 : index
    %0 = vector.load %arg3[%c0, %c0_0] : memref<256x512xf32, #tpu.memory_space<vmem>>, vector<256x512xf32>
    %c256_i32 = arith.constant 256 : i32
    %1 = arith.muli %arg0, %c256_i32 : i32
    %2 = tpu.iota {dimensions = array<i32: 0>} : vector<256x512xi32>
    %3 = vector.broadcast %1 : i32 to vector<256x512xi32>
    %4 = arith.addi %3, %2 : vector<256x512xi32>
    %c384_i32 = arith.constant 384 : i32
    %5 = vector.broadcast %c384_i32 : i32 to vector<256x512xi32>
    %6 = arith.cmpi slt, %4, %5 : vector<256x512xi32>
    %cst = arith.constant 0.000000e+00 : f32
    %7 = vector.broadcast %cst : f32 to vector<256x512xf32>
    %8 = arith.select %6, %0, %7 : vector<256x512xi1>, vector<256x512xf32>
    %9 = arith.mulf %8, %8 : vector<256x512xf32>
    %cst_1 = arith.constant dense<0.000000e+00> : vector<256xf32>
    %10 = vector.multi_reduction <add>, %9, %cst_1 [1] : vector<256x512xf32> to vector<256xf32>
    %11 = vector.shape_cast %10 : vector<256xf32> to vector<256x1xf32>
    %cst_2 = arith.constant 1.000000e-24 : f32
    %12 = vector.broadcast %cst_2 : f32 to vector<256x1xf32>
    %13 = arith.maximumf %11, %12 : vector<256x1xf32>
    %14 = math.rsqrt %13 : vector<256x1xf32>
    %15 = vector.broadcast %14 : vector<256x1xf32> to vector<256x512xf32>
    %16 = arith.mulf %8, %15 : vector<256x512xf32>
    %c0_3 = arith.constant 0 : index
    %c0_4 = arith.constant 0 : index
    %17 = vector.load %arg2[%c0_3, %c0_4] : memref<8x512xf32, #tpu.memory_space<vmem>>, vector<8x512xf32>
    %cst_5 = arith.constant dense<0.000000e+00> : vector<8x256xf32>
    %18 = tpu.matmul %17, %16, %cst_5 {dimension_numbers = #tpu.dot_dimension_numbers<[1], [1], [0], [0], [0, 0, 1, 0], [], []>} : vector<8x512xf32>, vector<256x512xf32>, vector<8x256xf32> -> vector<8x256xf32>
    %cst_6 = arith.constant -1.000000e+00 : f32
    %cst_7 = arith.constant 1.000000e+00 : f32
    %19 = vector.broadcast %cst_6 : f32 to vector<8x256xf32>
    %20 = arith.maximumf %19, %18 : vector<8x256xf32>
    %21 = vector.broadcast %cst_7 : f32 to vector<8x256xf32>
    %22 = arith.minimumf %21, %20 : vector<8x256xf32>
    %c0_8 = arith.constant 0 : index
    %c0_9 = arith.constant 0 : index
    %23 = vector.load %arg4[%c0_8, %c0_9] : memref<8x256xf32, #tpu.memory_space<vmem>>, vector<8x256xf32>
    tpu.vector_store %arg4[%c0_8, %c0_9], %22 {strides = array<i32>} : memref<8x256xf32, #tpu.memory_space<vmem>>, vector<8x256xf32>,
    return
  }
  func.func @transform_0(%arg0: i32, %arg1: i32) -> (i32, i32) {
    %c0_i32 = arith.constant 0 : i32
    %c0_i32_0 = arith.constant 0 : i32
    return %arg1, %c0_i32 : i32, i32
  }
  func.func @transform_1(%arg0: i32, %arg1: i32) -> (i32, i32) {
    %c0_i32 = arith.constant 0 : i32
    %c0_i32_0 = arith.constant 0 : i32
    return %arg0, %c0_i32 : i32, i32
  }
  func.func @transform_2(%arg0: i32, %arg1: i32) -> (i32, i32) {
    %c0_i32 = arith.constant 0 : i32
    return %arg1, %arg0 : i32, i32
  }
}

</mosaic_0001>

<llo_original>
// kernel: face_recog_fc.1
$region0: #{face_recog_fc.1}
  #allocation0 [shape = 'u32[]', space=smem, size = 0x4, offset = 0x4, fixed_abs, tag = 'smem constant byte address 0x4 - core index']
  #allocation1 [shape = 'u32[144,128]{1,0:T(1,128)}', space=vmem, size = 0x12000, scoped, tag = 'internal scratch']
  %s0 = inlined_call_operand.vmem [shape: f32[8,512], index: 0, kind: input, shape index: {}]
  %s1 = inlined_call_operand.hbm [shape: f32[384,512], index: 1, kind: input, shape index: {}]
  %s2 = inlined_call_operand.vmem [shape: f32[8,512], index: 2, kind: output, shape index: {}]
  %s3 = sld [smem:[#allocation0]]
  $region45: #{face_recog_fc.1} parent=0
    _
  %s5 = ssub.s32 1, %s3
  %s6 = scalar_select 0, %s5, %s3
  $region1: #{face_recog_fc.1} parent=0
    #allocation2 [shape = 'u8[1048576]{0}', space=vmem, size = 0x100000, scoped, tag = 'input window, operand 1']
    #allocation3 [shape = 's32[2]{0}', space=sflag, size = 0x8, scoped, tag = 'scoped memory for face_recog_fc.1']
    %7 = vsyncpa [#allocation3], 0
    %s8 = scalar_lea.sflag [#allocation3], 1
    %9 = vsyncpa %s8, 0
    loop: start=0, step=1, limit=4
    $region2: #{face_recog_fc.1} parent=1 // loop_pre_header
      _
    $region3: #{face_recog_fc.1} parent=1 // loop_header
      %s11 = sphi 0, %s15
      %p12 = scmp.ge.s32.totalorder %s11, 4
      %s18 = sphi 0, %s30
      %s19 = sphi 0, %s26
      %s20 = sphi 0, %s18
      %s21 = sphi 0, %s19
      %s22 = sphi 0, %s20
      %s23 = sphi 0, %s21
      %s33 = sphi 0, %s35
      %s36 = sphi 0, %s33
      %s37 = sphi 0, %s36
      %s53 = sphi 0, %s37
      %s59 = sphi 0, %s61
      %s62 = sphi 0, %s59
      %s63 = sphi 0, %s62
      %s79 = sphi 0, %s63
      %s87 = sphi 0, %s89
      %s90 = sphi 0, %s87
      %s91 = sphi 0, %s90
      %s107 = sphi 0, %s91
    $region4: #{face_recog_fc.1} parent=1 // loop_header_branch
      %14 = sbr.rel (%p12) target = $region8
    $region5: #{face_recog_fc.1} parent=1 // loop_body
      %s16 = ssub.s32 %s11, 1
      %s17 = ssub.s32 %s11, 2
      %s24 = sadd.s32 1, %s19
      %p25 = scmp.ge.s32.totalorder %s24, 1
      %s26 = scalar_select %p25, 0, %s24
      %s27 = sadd.s32 1, %s18
      %s28 = scalar_select %p25, %s27, %s18
      %p29 = scmp.ge.s32.totalorder %s28, 2
      %s30 = scalar_select %p29, 0, %s28
      %s31 = ssub.s32 %s19, %s26
      %p32 = scmp.eq.s32.totalorder %s31, 0
      %s34 = sadd.s32 %s33, 1
      %s35 = scalar_select %p32, %s33, %s34
      %p38 = pneg %p32
      %p39 = scmp.eq.s32.totalorder %s11, 1
      %p40 = por %p38, %p39
      %p41 = scmp.ne.s32.totalorder %s33, %s36
      %p42 = scmp.eq.s32.totalorder %s11, 0
      %p43 = por %p41, %p42
      %p44 = scmp.ne.s32.totalorder %s33, %s36
      %p45 = scmp.eq.s32.totalorder %s16, 1
      %p46 = por %p44, %p45
      %p47 = scmp.ne.s32.totalorder %s36, %s37
      %p48 = scmp.eq.s32.totalorder %s16, 0
      %p49 = por %p47, %p48
      %p50 = scmp.ne.s32.totalorder %s36, %s37
      %p51 = scmp.eq.s32.totalorder %s17, 1
      %p52 = por %p50, %p51
      %p54 = scmp.ne.s32.totalorder %s37, %s53
      %p55 = scmp.eq.s32.totalorder %s17, 0
      %p56 = por %p54, %p55
      %s57 = ssub.s32 %s18, %s30
      %p58 = scmp.eq.s32.totalorder %s57, 0
      %s60 = sadd.s32 %s59, 1
      %s61 = scalar_select %p58, %s59, %s60
      %p64 = pneg %p58
      %p65 = scmp.eq.s32.totalorder %s11, 1
      %p66 = por %p64, %p65
      %p67 = scmp.ne.s32.totalorder %s59, %s62
      %p68 = scmp.eq.s32.totalorder %s11, 0
      %p69 = por %p67, %p68
      %p70 = scmp.ne.s32.totalorder %s59, %s62
      %p71 = scmp.eq.s32.totalorder %s16, 1
      %p72 = por %p70, %p71
      %p73 = scmp.ne.s32.totalorder %s62, %s63
      %p74 = scmp.eq.s32.totalorder %s16, 0
      %p75 = por %p73, %p74
      %p76 = scmp.ne.s32.totalorder %s62, %s63
      %p77 = scmp.eq.s32.totalorder %s17, 1
      %p78 = por %p76, %p77
      %p80 = scmp.ne.s32.totalorder %s63, %s79
      %p81 = scmp.eq.s32.totalorder %s17, 0
      %p82 = por %p80, %p81
      %s83 = ssub.s32 %s19, %s26
      %s84 = ssub.s32 %s18, %s30
      %s85 = sor.u32 %s83, %s84
      %p86 = scmp.eq.s32.totalorder %s85, 0
      %s88 = sadd.s32 %s87, 1
      %s89 = scalar_select %p86, %s87, %s88
      %p92 = pneg %p86
      %p93 = scmp.eq.s32.totalorder %s11, 1
      %p94 = por %p92, %p93
      %p95 = scmp.ne.s32.totalorder %s87, %s90
      %p96 = scmp.eq.s32.totalorder %s11, 0
      %p97 = por %p95, %p96
      %p98 = scmp.ne.s32.totalorder %s87, %s90
      %p99 = scmp.eq.s32.totalorder %s16, 1
      %p100 = por %p98, %p99
      %p101 = scmp.ne.s32.totalorder %s90, %s91
      %p102 = scmp.eq.s32.totalorder %s16, 0
      %p103 = por %p101, %p102
      %p104 = scmp.ne.s32.totalorder %s90, %s91
      %p105 = scmp.eq.s32.totalorder %s17, 1
      %p106 = por %p104, %p105
      %p108 = scmp.ne.s32.totalorder %s91, %s107
      %p109 = scmp.eq.s32.totalorder %s17, 0
      %p110 = por %p108, %p109
      %p111 = scmp.le.s32.totalorder 1, %s11
      %p112 = scmp.lt.s32.totalorder %s11, 3
      %p113 = pnand %p111, %p112
      %p114 = pneg %p113
      // Predicated region
      $region9: #{face_recog_fc.1} parent=5 // pred_check
        _
      $region10: #{face_recog_fc.1} parent=5 // pred_check_branch
        %116 = sbr.rel (%p113) target = $region12
      $region11: #{face_recog_fc.1} parent=5 // pred_region
        %s117 = ssub.s32 %s11, 1
        // Predicated region
        $region13: #{face_recog_fc.1} parent=11 // pred_check
          %p118 = pneg %p49
        $region14: #{face_recog_fc.1} parent=11 // pred_check_branch
          %120 = sbr.rel (%p118) target = $region16
        $region15: #{face_recog_fc.1} parent=11 // pred_region
          %p121 = scmp.lt.s32.totalorder %s21, 0
          %s122 = scalar_select %p121, %s21, 0
          %s123 = smul.addr %s122, 4
          %s124 = smul.addr %s123, 8
          %s125 = scalar_lea.vmem %s0, %s124
        $region16: #{face_recog_fc.1} parent=11 // pred_fallthru
          _
      $region12: #{face_recog_fc.1} parent=5 // pred_fallthru
        _
      %p126 = scmp.lt.s32.totalorder %s11, 2
      // Predicated region
      $region17: #{face_recog_fc.1} parent=5 // pred_check
        %p127 = pneg %p126
      $region18: #{face_recog_fc.1} parent=5 // pred_check_branch
        %129 = sbr.rel (%p127) target = $region20
      $region19: #{face_recog_fc.1} parent=5 // pred_region
        // Predicated region
        $region21: #{face_recog_fc.1} parent=19 // pred_check
          %p130 = pneg %p69
        $region22: #{face_recog_fc.1} parent=19 // pred_check_branch
          %132 = sbr.rel (%p130) target = $region24
        $region23: #{face_recog_fc.1} parent=19 // pred_region
          %s133 = sand.u32 %s59, 1
          %s134 = scalar_lea.sflag [#allocation3], %s133
          %s135 = sand.u32 %s59, 1
          %s136 = smul.addr %s135, 1024
          %s137 = scalar_lea.vmem [#allocation2], %s136
          %s138 = smul.u32 32, %s18
          %s139 = ssub.s32 48, %s138
          %p140 = scmp.lt.s32.totalorder %s139, 32
          %s141 = scalar_select %p140, %s139, 32
          %s142 = smul.u32 128, %s141
          %s143 = smul.u32 %s142, 4
          %s145 = ssub.s32 16384, %s143
          %146 = vsyncadd %s134, %s145
          %p147 = scmp.ne.s32.totalorder 0, %s143
          %s148 = smul.addr %s138, 4
          %s149 = smul.addr %s148, 128
          %s150 = scalar_lea.hbm %s1, %s149
          %s151 = smul.u32 32, %s141
          %s152 = sshll.u32 %s137, 4
          %s153 = int_to_ptr.vmem [resolvable:$true] %s152
          %s154 = sshll.u32 %s151, 4
          %158 = dma.hbm_to_vmem [thread:$0]  (%p147), %s150, %s154, %s153, %s134, 512, 512, 32
        $region24: #{face_recog_fc.1} parent=19 // pred_fallthru
          _
      $region20: #{face_recog_fc.1} parent=5 // pred_fallthru
        _
      %p159 = scmp.le.s32.totalorder 1, %s11
      %p160 = scmp.lt.s32.totalorder %s11, 3
      %p161 = pnand %p159, %p160
      %p162 = pneg %p161
      // Predicated region
      $region25: #{face_recog_fc.1} parent=5 // pred_check
        _
      $region26: #{face_recog_fc.1} parent=5 // pred_check_branch
        %164 = sbr.rel (%p161) target = $region28
      $region27: #{face_recog_fc.1} parent=5 // pred_region
        %s165 = ssub.s32 %s11, 1
        %s166 = sand.u32 %s62, 1
        %s167 = scalar_lea.sflag [#allocation3], %s166
        %s168 = sand.u32 %s62, 1
        %s169 = smul.addr %s168, 1024
        %s170 = scalar_lea.vmem [#allocation2], %s169
        // Predicated region
        $region29: #{face_recog_fc.1} parent=27 // pred_check
          %p171 = pneg %p75
        $region30: #{face_recog_fc.1} parent=27 // pred_check_branch
          %173 = sbr.rel (%p171) target = $region32
        $region31: #{face_recog_fc.1} parent=27 // pred_region
          %174 = dma.done %s167, 16384
        $region32: #{face_recog_fc.1} parent=27 // pred_fallthru
          _
        %p175 = scmp.lt.s32.totalorder %s21, 0
        %s176 = scalar_select %p175, %s21, 0
        %s177 = smul.addr %s176, 4
        %s178 = smul.addr %s177, 8
        %s179 = scalar_lea.vmem %s0, %s178
        %p180 = pneg %p49
        %p181 = pneg %p46
        %s182 = sand.u32 %s62, 1
        %s183 = scalar_lea.sflag [#allocation3], %s182
        %s184 = sand.u32 %s62, 1
        %s185 = smul.addr %s184, 1024
        %s186 = scalar_lea.vmem [#allocation2], %s185
        %p187 = pneg %p75
        %p188 = pneg %p72
        %p189 = pneg %p103
        %p190 = pneg %p100
        %s191 = smul.u32 2, %s20
        %p192 = scmp.lt.s32.totalorder %s21, 0
        %s193 = scalar_select %p192, %s21, 0
        %p194 = scmp.lt.s32.totalorder %s191, 3
        %s195 = scalar_select %p194, %s191, 3
        %s196 = smul.addr %s193, 4
        %s197 = sadd.s32 %s195, %s196
        %s198 = smul.addr %s197, 8
        %s199 = scalar_lea.vmem %s2, %s198
        %p200 = scmp.lt.s32.totalorder %s21, 0
        %s201 = scalar_select %p200, %s21, 0
        %s202 = smul.addr %s201, 4
        %s203 = smul.addr %s202, 8
        %s204 = scalar_lea.vmem %s0, %s203
        %s205 = smul.u32 32, %s20
        %s206 = ssub.s32 48, %s205
        %p207 = scmp.lt.s32.totalorder %s206, 32
        %s208 = scalar_select %p207, %s206, 32
        %s209 = smul.u32 128, %s208
        %s210 = smul.u32 %s209, 4
        %s211 = smul.u32 2, %s20
        %p212 = scmp.lt.s32.totalorder %s21, 0
        %s213 = scalar_select %p212, %s21, 0
        %p214 = scmp.lt.s32.totalorder %s211, 3
        %s215 = scalar_select %p214, %s211, 3
        %s216 = smul.addr %s213, 4
        %s217 = sadd.s32 %s215, %s216
        %s218 = smul.addr %s217, 8
        %s219 = scalar_lea.vmem %s2, %s218
        %s220 = smul.u32 2, %s20
        %v221 = vld [vmem:[%s170] sm:$0xff]
        %v222 = vld [vmem:[%s170 + $0x8] sm:$0xff]
        %v223 = vld [vmem:[%s170 + $0x10] sm:$0xff]
        %v224 = vld [vmem:[%s170 + $0x18] sm:$0xff]
        %v225 = vld [vmem:[%s170 + $0x20] sm:$0xff]
        %v226 = vld [vmem:[%s170 + $0x28] sm:$0xff]
        %v227 = vld [vmem:[%s170 + $0x30] sm:$0xff]
        %v228 = vld [vmem:[%s170 + $0x38] sm:$0xff]
        %v229 = vld [vmem:[%s170 + $0x40] sm:$0xff]
        %v230 = vld [vmem:[%s170 + $0x48] sm:$0xff]
        %v231 = vld [vmem:[%s170 + $0x50] sm:$0xff]
        %v232 = vld [vmem:[%s170 + $0x58] sm:$0xff]
        %v233 = vld [vmem:[%s170 + $0x60] sm:$0xff]
        %v234 = vld [vmem:[%s170 + $0x68] sm:$0xff]
        %v235 = vld [vmem:[%s170 + $0x70] sm:$0xff]
        %v236 = vld [vmem:[%s170 + $0x78] sm:$0xff]
        %v237 = vld [vmem:[%s170 + $0x80] sm:$0xff]
        %v238 = vld [vmem:[%s170 + $0x88] sm:$0xff]
        %v239 = vld [vmem:[%s170 + $0x90] sm:$0xff]
        %v240 = vld [vmem:[%s170 + $0x98] sm:$0xff]
        %v241 = vld [vmem:[%s170 + $0xa0] sm:$0xff]
        %v242 = vld [vmem:[%s170 + $0xa8] sm:$0xff]
        %v243 = vld [vmem:[%s170 + $0xb0] sm:$0xff]
        %v244 = vld [vmem:[%s170 + $0xb8] sm:$0xff]
        %v245 = vld [vmem:[%s170 + $0xc0] sm:$0xff]
        %v246 = vld [vmem:[%s170 + $0xc8] sm:$0xff]
        %v247 = vld [vmem:[%s170 + $0xd0] sm:$0xff]
        %v248 = vld [vmem:[%s170 + $0xd8] sm:$0xff]
        %v249 = vld [vmem:[%s170 + $0xe0] sm:$0xff]
        %v250 = vld [vmem:[%s170 + $0xe8] sm:$0xff]
        %v251 = vld [vmem:[%s170 + $0xf0] sm:$0xff]
        %v252 = vld [vmem:[%s170 + $0xf8] sm:$0xff]
        %v253 = vld [vmem:[%s170 + $0x100] sm:$0xff]
        %v254 = vld [vmem:[%s170 + $0x108] sm:$0xff]
        %v255 = vld [vmem:[%s170 + $0x110] sm:$0xff]
        %v256 = vld [vmem:[%s170 + $0x118] sm:$0xff]
        %v257 = vld [vmem:[%s170 + $0x120] sm:$0xff]
        %v258 = vld [vmem:[%s170 + $0x128] sm:$0xff]
        %v259 = vld [vmem:[%s170 + $0x130] sm:$0xff]
        %v260 = vld [vmem:[%s170 + $0x138] sm:$0xff]
        %v261 = vld [vmem:[%s170 + $0x140] sm:$0xff]
        %v262 = vld [vmem:[%s170 + $0x148] sm:$0xff]
        %v263 = vld [vmem:[%s170 + $0x150] sm:$0xff]
        %v264 = vld [vmem:[%s170 + $0x158] sm:$0xff]
        %v265 = vld [vmem:[%s170 + $0x160] sm:$0xff]
        %v266 = vld [vmem:[%s170 + $0x168] sm:$0xff]
        %v267 = vld [vmem:[%s170 + $0x170] sm:$0xff]
        %v268 = vld [vmem:[%s170 + $0x178] sm:$0xff]
        %v269 = vld [vmem:[%s170 + $0x180] sm:$0xff]
        %v270 = vld [vmem:[%s170 + $0x188] sm:$0xff]
        %v271 = vld [vmem:[%s170 + $0x190] sm:$0xff]
        %v272 = vld [vmem:[%s170 + $0x198] sm:$0xff]
        %v273 = vld [vmem:[%s170 + $0x1a0] sm:$0xff]
        %v274 = vld [vmem:[%s170 + $0x1a8] sm:$0xff]
        %v275 = vld [vmem:[%s170 + $0x1b0] sm:$0xff]
        %v276 = vld [vmem:[%s170 + $0x1b8] sm:$0xff]
        %v277 = vld [vmem:[%s170 + $0x1c0] sm:$0xff]
        %v278 = vld [vmem:[%s170 + $0x1c8] sm:$0xff]
        %v279 = vld [vmem:[%s170 + $0x1d0] sm:$0xff]
        %v280 = vld [vmem:[%s170 + $0x1d8] sm:$0xff]
        %v281 = vld [vmem:[%s170 + $0x1e0] sm:$0xff]
        %v282 = vld [vmem:[%s170 + $0x1e8] sm:$0xff]
        %v283 = vld [vmem:[%s170 + $0x1f0] sm:$0xff]
        %v284 = vld [vmem:[%s170 + $0x1f8] sm:$0xff]
        %v285 = vld [vmem:[%s170 + $0x200] sm:$0xff]
        %v286 = vld [vmem:[%s170 + $0x208] sm:$0xff]
        %v287 = vld [vmem:[%s170 + $0x210] sm:$0xff]
        %v288 = vld [vmem:[%s170 + $0x218] sm:$0xff]
        %v289 = vld [vmem:[%s170 + $0x220] sm:$0xff]
        %v290 = vld [vmem:[%s170 + $0x228] sm:$0xff]
        %v291 = vld [vmem:[%s170 + $0x230] sm:$0xff]
        %v292 = vld [vmem:[%s170 + $0x238] sm:$0xff]
        %v293 = vld [vmem:[%s170 + $0x240] sm:$0xff]
        %v294 = vld [vmem:[%s170 + $0x248] sm:$0xff]
        %v295 = vld [vmem:[%s170 + $0x250] sm:$0xff]
        %v296 = vld [vmem:[%s170 + $0x258] sm:$0xff]
        %v297 = vld [vmem:[%s170 + $0x260] sm:$0xff]
        %v298 = vld [vmem:[%s170 + $0x268] sm:$0xff]
        %v299 = vld [vmem:[%s170 + $0x270] sm:$0xff]
        %v300 = vld [vmem:[%s170 + $0x278] sm:$0xff]
        %v301 = vld [vmem:[%s170 + $0x280] sm:$0xff]
        %v302 = vld [vmem:[%s170 + $0x288] sm:$0xff]
        %v303 = vld [vmem:[%s170 + $0x290] sm:$0xff]
        %v304 = vld [vmem:[%s170 + $0x298] sm:$0xff]
        %v305 = vld [vmem:[%s170 + $0x2a0] sm:$0xff]
        %v306 = vld [vmem:[%s170 + $0x2a8] sm:$0xff]
        %v307 = vld [vmem:[%s170 + $0x2b0] sm:$0xff]
        %v308 = vld [vmem:[%s170 + $0x2b8] sm:$0xff]
        %v309 = vld [vmem:[%s170 + $0x2c0] sm:$0xff]
        %v310 = vld [vmem:[%s170 + $0x2c8] sm:$0xff]
        %v311 = vld [vmem:[%s170 + $0x2d0] sm:$0xff]
        %v312 = vld [vmem:[%s170 + $0x2d8] sm:$0xff]
        %v313 = vld [vmem:[%s170 + $0x2e0] sm:$0xff]
        %v314 = vld [vmem:[%s170 + $0x2e8] sm:$0xff]
        %v315 = vld [vmem:[%s170 + $0x2f0] sm:$0xff]
        %v316 = vld [vmem:[%s170 + $0x2f8] sm:$0xff]
        %v317 = vld [vmem:[%s170 + $0x300] sm:$0xff]
        %v318 = vld [vmem:[%s170 + $0x308] sm:$0xff]
        %v319 = vld [vmem:[%s170 + $0x310] sm:$0xff]
        %v320 = vld [vmem:[%s170 + $0x318] sm:$0xff]
        %v321 = vld [vmem:[%s170 + $0x320] sm:$0xff]
        %v322 = vld [vmem:[%s170 + $0x328] sm:$0xff]
        %v323 = vld [vmem:[%s170 + $0x330] sm:$0xff]
        %v324 = vld [vmem:[%s170 + $0x338] sm:$0xff]
        %v325 = vld [vmem:[%s170 + $0x340] sm:$0xff]
        %v326 = vld [vmem:[%s170 + $0x348] sm:$0xff]
        %v327 = vld [vmem:[%s170 + $0x350] sm:$0xff]
        %v328 = vld [vmem:[%s170 + $0x358] sm:$0xff]
        %v329 = vld [vmem:[%s170 + $0x360] sm:$0xff]
        %v330 = vld [vmem:[%s170 + $0x368] sm:$0xff]
        %v331 = vld [vmem:[%s170 + $0x370] sm:$0xff]
        %v332 = vld [vmem:[%s170 + $0x378] sm:$0xff]
        %v333 = vld [vmem:[%s170 + $0x380] sm:$0xff]
        %v334 = vld [vmem:[%s170 + $0x388] sm:$0xff]
        %v335 = vld [vmem:[%s170 + $0x390] sm:$0xff]
        %v336 = vld [vmem:[%s170 + $0x398] sm:$0xff]
        %v337 = vld [vmem:[%s170 + $0x3a0] sm:$0xff]
        %v338 = vld [vmem:[%s170 + $0x3a8] sm:$0xff]
        %v339 = vld [vmem:[%s170 + $0x3b0] sm:$0xff]
        %v340 = vld [vmem:[%s170 + $0x3b8] sm:$0xff]
        %v341 = vld [vmem:[%s170 + $0x3c0] sm:$0xff]
        %v342 = vld [vmem:[%s170 + $0x3c8] sm:$0xff]
        %v343 = vld [vmem:[%s170 + $0x3d0] sm:$0xff]
        %v344 = vld [vmem:[%s170 + $0x3d8] sm:$0xff]
        %v345 = vld [vmem:[%s170 + $0x3e0] sm:$0xff]
        %v346 = vld [vmem:[%s170 + $0x3e8] sm:$0xff]
        %v347 = vld [vmem:[%s170 + $0x3f0] sm:$0xff]
        %v348 = vld [vmem:[%s170 + $0x3f8] sm:$0xff]
        %s349 = smul.u32 %s20, 256
        %v350 = vlaneseq
        %v351 = vshrl.u32 %v350, 7
        %v352 = vadd.s32 %v351, 8
        %v353 = vadd.s32 %v351, 16
        %v354 = vadd.s32 %v351, 24
        %v355 = vadd.s32 %v351, 32
        %v356 = vadd.s32 %v351, 40
        %v357 = vadd.s32 %v351, 48
        %v358 = vadd.s32 %v351, 56
        %v359 = vadd.s32 %v351, 64
        %v360 = vadd.s32 %v351, 72
        %v361 = vadd.s32 %v351, 80
        %v362 = vadd.s32 %v351, 88
        %v363 = vadd.s32 %v351, 96
        %v364 = vadd.s32 %v351, 104
        %v365 = vadd.s32 %v351, 112
        %v366 = vadd.s32 %v351, 120
        %v367 = vadd.s32 %v351, 128
        %v368 = vadd.s32 %v351, 136
        %v369 = vadd.s32 %v351, 144
        %v370 = vadd.s32 %v351, 152
        %v371 = vadd.s32 %v351, 160
        %v372 = vadd.s32 %v351, 168
        %v373 = vadd.s32 %v351, 176
        %v374 = vadd.s32 %v351, 184
        %v375 = vadd.s32 %v351, 192
        %v376 = vadd.s32 %v351, 200
        %v377 = vadd.s32 %v351, 208
        %v378 = vadd.s32 %v351, 216
        %v379 = vadd.s32 %v351, 224
        %v380 = vadd.s32 %v351, 232
        %v381 = vadd.s32 %v351, 240
        %v382 = vadd.s32 %v351, 248
        %v383 = vstv %s349
        %v384 = vadd.s32 %v383, %v351
        %v385 = vadd.s32 %v383, %v352
        %v386 = vadd.s32 %v383, %v353
        %v387 = vadd.s32 %v383, %v354
        %v388 = vadd.s32 %v383, %v355
        %v389 = vadd.s32 %v383, %v356
        %v390 = vadd.s32 %v383, %v357
        %v391 = vadd.s32 %v383, %v358
        %v392 = vadd.s32 %v383, %v359
        %v393 = vadd.s32 %v383, %v360
        %v394 = vadd.s32 %v383, %v361
        %v395 = vadd.s32 %v383, %v362
        %v396 = vadd.s32 %v383, %v363
        %v397 = vadd.s32 %v383, %v364
        %v398 = vadd.s32 %v383, %v365
        %v399 = vadd.s32 %v383, %v366
        %v400 = vadd.s32 %v383, %v367
        %v401 = vadd.s32 %v383, %v368
        %v402 = vadd.s32 %v383, %v369
        %v403 = vadd.s32 %v383, %v370
        %v404 = vadd.s32 %v383, %v371
        %v405 = vadd.s32 %v383, %v372
        %v406 = vadd.s32 %v383, %v373
        %v407 = vadd.s32 %v383, %v374
        %v408 = vadd.s32 %v383, %v375
        %v409 = vadd.s32 %v383, %v376
        %v410 = vadd.s32 %v383, %v377
        %v411 = vadd.s32 %v383, %v378
        %v412 = vadd.s32 %v383, %v379
        %v413 = vadd.s32 %v383, %v380
        %v414 = vadd.s32 %v383, %v381
        %v415 = vadd.s32 %v383, %v382
        %vm416 = vcmp.lt.s32.totalorder %v384, 384
        %vm417 = vcmp.lt.s32.totalorder %v385, 384
        %vm418 = vcmp.lt.s32.totalorder %v386, 384
        %vm419 = vcmp.lt.s32.totalorder %v387, 384
        %vm420 = vcmp.lt.s32.totalorder %v388, 384
        %vm421 = vcmp.lt.s32.totalorder %v389, 384
        %vm422 = vcmp.lt.s32.totalorder %v390, 384
        %vm423 = vcmp.lt.s32.totalorder %v391, 384
        %vm424 = vcmp.lt.s32.totalorder %v392, 384
        %vm425 = vcmp.lt.s32.totalorder %v393, 384
        %vm426 = vcmp.lt.s32.totalorder %v394, 384
        %vm427 = vcmp.lt.s32.totalorder %v395, 384
        %vm428 = vcmp.lt.s32.totalorder %v396, 384
        %vm429 = vcmp.lt.s32.totalorder %v397, 384
        %vm430 = vcmp.lt.s32.totalorder %v398, 384
        %vm431 = vcmp.lt.s32.totalorder %v399, 384
        %vm432 = vcmp.lt.s32.totalorder %v400, 384
        %vm433 = vcmp.lt.s32.totalorder %v401, 384
        %vm434 = vcmp.lt.s32.totalorder %v402, 384
        %vm435 = vcmp.lt.s32.totalorder %v403, 384
        %vm436 = vcmp.lt.s32.totalorder %v404, 384
        %vm437 = vcmp.lt.s32.totalorder %v405, 384
        %vm438 = vcmp.lt.s32.totalorder %v406, 384
        %vm439 = vcmp.lt.s32.totalorder %v407, 384
        %vm440 = vcmp.lt.s32.totalorder %v408, 384
        %vm441 = vcmp.lt.s32.totalorder %v409, 384
        %vm442 = vcmp.lt.s32.totalorder %v410, 384
        %vm443 = vcmp.lt.s32.totalorder %v411, 384
        %vm444 = vcmp.lt.s32.totalorder %v412, 384
        %vm445 = vcmp.lt.s32.totalorder %v413, 384
        %vm446 = vcmp.lt.s32.totalorder %v414, 384
        %vm447 = vcmp.lt.s32.totalorder %v415, 384
        %v448 = vsel %vm416, %v221, 0.0
        %v449 = vsel %vm416, %v222, 0.0
        %v450 = vsel %vm416, %v223, 0.0
        %v451 = vsel %vm416, %v224, 0.0
        %v452 = vsel %vm417, %v225, 0.0
        %v453 = vsel %vm417, %v226, 0.0
        %v454 = vsel %vm417, %v227, 0.0
        %v455 = vsel %vm417, %v228, 0.0
        %v456 = vsel %vm418, %v229, 0.0
        %v457 = vsel %vm418, %v230, 0.0
        %v458 = vsel %vm418, %v231, 0.0
        %v459 = vsel %vm418, %v232, 0.0
        %v460 = vsel %vm419, %v233, 0.0
        %v461 = vsel %vm419, %v234, 0.0
        %v462 = vsel %vm419, %v235, 0.0
        %v463 = vsel %vm419, %v236, 0.0
        %v464 = vsel %vm420, %v237, 0.0
        %v465 = vsel %vm420, %v238, 0.0
        %v466 = vsel %vm420, %v239, 0.0
        %v467 = vsel %vm420, %v240, 0.0
        %v468 = vsel %vm421, %v241, 0.0
        %v469 = vsel %vm421, %v242, 0.0
        %v470 = vsel %vm421, %v243, 0.0
        %v471 = vsel %vm421, %v244, 0.0
        %v472 = vsel %vm422, %v245, 0.0
        %v473 = vsel %vm422, %v246, 0.0
        %v474 = vsel %vm422, %v247, 0.0
        %v475 = vsel %vm422, %v248, 0.0
        %v476 = vsel %vm423, %v249, 0.0
        %v477 = vsel %vm423, %v250, 0.0
        %v478 = vsel %vm423, %v251, 0.0
        %v479 = vsel %vm423, %v252, 0.0
        %v480 = vsel %vm424, %v253, 0.0
        %v481 = vsel %vm424, %v254, 0.0
        %v482 = vsel %vm424, %v255, 0.0
        %v483 = vsel %vm424, %v256, 0.0
        %v484 = vsel %vm425, %v257, 0.0
        %v485 = vsel %vm425, %v258, 0.0
        %v486 = vsel %vm425, %v259, 0.0
        %v487 = vsel %vm425, %v260, 0.0
        %v488 = vsel %vm426, %v261, 0.0
        %v489 = vsel %vm426, %v262, 0.0
        %v490 = vsel %vm426, %v263, 0.0
        %v491 = vsel %vm426, %v264, 0.0
        %v492 = vsel %vm427, %v265, 0.0
        %v493 = vsel %vm427, %v266, 0.0
        %v494 = vsel %vm427, %v267, 0.0
        %v495 = vsel %vm427, %v268, 0.0
        %v496 = vsel %vm428, %v269, 0.0
        %v497 = vsel %vm428, %v270, 0.0
        %v498 = vsel %vm428, %v271, 0.0
        %v499 = vsel %vm428, %v272, 0.0
        %v500 = vsel %vm429, %v273, 0.0
        %v501 = vsel %vm429, %v274, 0.0
        %v502 = vsel %vm429, %v275, 0.0
        %v503 = vsel %vm429, %v276, 0.0
        %v504 = vsel %vm430, %v277, 0.0
        %v505 = vsel %vm430, %v278, 0.0
        %v506 = vsel %vm430, %v279, 0.0
        %v507 = vsel %vm430, %v280, 0.0
        %v508 = vsel %vm431, %v281, 0.0
        %v509 = vsel %vm431, %v282, 0.0
        %v510 = vsel %vm431, %v283, 0.0
        %v511 = vsel %vm431, %v284, 0.0
        %v512 = vsel %vm432, %v285, 0.0
        %v513 = vsel %vm432, %v286, 0.0
        %v514 = vsel %vm432, %v287, 0.0
        %v515 = vsel %vm432, %v288, 0.0
        %v516 = vsel %vm433, %v289, 0.0
        %v517 = vsel %vm433, %v290, 0.0
        %v518 = vsel %vm433, %v291, 0.0
        %v519 = vsel %vm433, %v292, 0.0
        %v520 = vsel %vm434, %v293, 0.0
        %v521 = vsel %vm434, %v294, 0.0
        %v522 = vsel %vm434, %v295, 0.0
        %v523 = vsel %vm434, %v296, 0.0
        %v524 = vsel %vm435, %v297, 0.0
        %v525 = vsel %vm435, %v298, 0.0
        %v526 = vsel %vm435, %v299, 0.0
        %v527 = vsel %vm435, %v300, 0.0
        %v528 = vsel %vm436, %v301, 0.0
        %v529 = vsel %vm436, %v302, 0.0
        %v530 = vsel %vm436, %v303, 0.0
        %v531 = vsel %vm436, %v304, 0.0
        %v532 = vsel %vm437, %v305, 0.0
        %v533 = vsel %vm437, %v306, 0.0
        %v534 = vsel %vm437, %v307, 0.0
        %v535 = vsel %vm437, %v308, 0.0
        %v536 = vsel %vm438, %v309, 0.0
        %v537 = vsel %vm438, %v310, 0.0
        %v538 = vsel %vm438, %v311, 0.0
        %v539 = vsel %vm438, %v312, 0.0
        %v540 = vsel %vm439, %v313, 0.0
        %v541 = vsel %vm439, %v314, 0.0
        %v542 = vsel %vm439, %v315, 0.0
        %v543 = vsel %vm439, %v316, 0.0
        %v544 = vsel %vm440, %v317, 0.0
        %v545 = vsel %vm440, %v318, 0.0
        %v546 = vsel %vm440, %v319, 0.0
        %v547 = vsel %vm440, %v320, 0.0
        %v548 = vsel %vm441, %v321, 0.0
        %v549 = vsel %vm441, %v322, 0.0
        %v550 = vsel %vm441, %v323, 0.0
        %v551 = vsel %vm441, %v324, 0.0
        %v552 = vsel %vm442, %v325, 0.0
        %v553 = vsel %vm442, %v326, 0.0
        %v554 = vsel %vm442, %v327, 0.0
        %v555 = vsel %vm442, %v328, 0.0
        %v556 = vsel %vm443, %v329, 0.0
        %v557 = vsel %vm443, %v330, 0.0
        %v558 = vsel %vm443, %v331, 0.0
        %v559 = vsel %vm443, %v332, 0.0
        %v560 = vsel %vm444, %v333, 0.0
        %v561 = vsel %vm444, %v334, 0.0
        %v562 = vsel %vm444, %v335, 0.0
        %v563 = vsel %vm444, %v336, 0.0
        %v564 = vsel %vm445, %v337, 0.0
        %v565 = vsel %vm445, %v338, 0.0
        %v566 = vsel %vm445, %v339, 0.0
        %v567 = vsel %vm445, %v340, 0.0
        %v568 = vsel %vm446, %v341, 0.0
        %v569 = vsel %vm446, %v342, 0.0
        %v570 = vsel %vm446, %v343, 0.0
        %v571 = vsel %vm446, %v344, 0.0
        %v572 = vsel %vm447, %v345, 0.0
        %v573 = vsel %vm447, %v346, 0.0
        %v574 = vsel %vm447, %v347, 0.0
        %v575 = vsel %vm447, %v348, 0.0
        %v576 = vmul.f32 %v448, %v448
        %v577 = vmul.f32 %v449, %v449
        %v578 = vmul.f32 %v450, %v450
        %v579 = vmul.f32 %v451, %v451
        %v580 = vmul.f32 %v452, %v452
        %v581 = vmul.f32 %v453, %v453
        %v582 = vmul.f32 %v454, %v454
        %v583 = vmul.f32 %v455, %v455
        %v584 = vmul.f32 %v456, %v456
        %v585 = vmul.f32 %v457, %v457
        %v586 = vmul.f32 %v458, %v458
        %v587 = vmul.f32 %v459, %v459
        %v588 = vmul.f32 %v460, %v460
        %v589 = vmul.f32 %v461, %v461
        %v590 = vmul.f32 %v462, %v462
        %v591 = vmul.f32 %v463, %v463
        %v592 = vmul.f32 %v464, %v464
        %v593 = vmul.f32 %v465, %v465
        %v594 = vmul.f32 %v466, %v466
        %v595 = vmul.f32 %v467, %v467
        %v596 = vmul.f32 %v468, %v468
        %v597 = vmul.f32 %v469, %v469
        %v598 = vmul.f32 %v470, %v470
        %v599 = vmul.f32 %v471, %v471
        %v600 = vmul.f32 %v472, %v472
        %v601 = vmul.f32 %v473, %v473
        %v602 = vmul.f32 %v474, %v474
        %v603 = vmul.f32 %v475, %v475
        %v604 = vmul.f32 %v476, %v476
        %v605 = vmul.f32 %v477, %v477
        %v606 = vmul.f32 %v478, %v478
        %v607 = vmul.f32 %v479, %v479
        %v608 = vmul.f32 %v480, %v480
        %v609 = vmul.f32 %v481, %v481
        %v610 = vmul.f32 %v482, %v482
        %v611 = vmul.f32 %v483, %v483
        %v612 = vmul.f32 %v484, %v484
        %v613 = vmul.f32 %v485, %v485
        %v614 = vmul.f32 %v486, %v486
        %v615 = vmul.f32 %v487, %v487
        %v616 = vmul.f32 %v488, %v488
        %v617 = vmul.f32 %v489, %v489
        %v618 = vmul.f32 %v490, %v490
        %v619 = vmul.f32 %v491, %v491
        %v620 = vmul.f32 %v492, %v492
        %v621 = vmul.f32 %v493, %v493
        %v622 = vmul.f32 %v494, %v494
        %v623 = vmul.f32 %v495, %v495
        %v624 = vmul.f32 %v496, %v496
        %v625 = vmul.f32 %v497, %v497
        %v626 = vmul.f32 %v498, %v498
        %v627 = vmul.f32 %v499, %v499
        %v628 = vmul.f32 %v500, %v500
        %v629 = vmul.f32 %v501, %v501
        %v630 = vmul.f32 %v502, %v502
        %v631 = vmul.f32 %v503, %v503
        %v632 = vmul.f32 %v504, %v504
        %v633 = vmul.f32 %v505, %v505
        %v634 = vmul.f32 %v506, %v506
        %v635 = vmul.f32 %v507, %v507
        %v636 = vmul.f32 %v508, %v508
        %v637 = vmul.f32 %v509, %v509
        %v638 = vmul.f32 %v510, %v510
        %v639 = vmul.f32 %v511, %v511
        %v640 = vmul.f32 %v512, %v512
        %v641 = vmul.f32 %v513, %v513
        %v642 = vmul.f32 %v514, %v514
        %v643 = vmul.f32 %v515, %v515
        %v644 = vmul.f32 %v516, %v516
        %v645 = vmul.f32 %v517, %v517
        %v646 = vmul.f32 %v518, %v518
        %v647 = vmul.f32 %v519, %v519
        %v648 = vmul.f32 %v520, %v520
        %v649 = vmul.f32 %v521, %v521
        %v650 = vmul.f32 %v522, %v522
        %v651 = vmul.f32 %v523, %v523
        %v652 = vmul.f32 %v524, %v524
        %v653 = vmul.f32 %v525, %v525
        %v654 = vmul.f32 %v526, %v526
        %v655 = vmul.f32 %v527, %v527
        %v656 = vmul.f32 %v528, %v528
        %v657 = vmul.f32 %v529, %v529
        %v658 = vmul.f32 %v530, %v530
        %v659 = vmul.f32 %v531, %v531
        %v660 = vmul.f32 %v532, %v532
        %v661 = vmul.f32 %v533, %v533
        %v662 = vmul.f32 %v534, %v534
        %v663 = vmul.f32 %v535, %v535
        %v664 = vmul.f32 %v536, %v536
        %v665 = vmul.f32 %v537, %v537
        %v666 = vmul.f32 %v538, %v538
        %v667 = vmul.f32 %v539, %v539
        %v668 = vmul.f32 %v540, %v540
        %v669 = vmul.f32 %v541, %v541
        %v670 = vmul.f32 %v542, %v542
        %v671 = vmul.f32 %v543, %v543
        %v672 = vmul.f32 %v544, %v544
        %v673 = vmul.f32 %v545, %v545
        %v674 = vmul.f32 %v546, %v546
        %v675 = vmul.f32 %v547, %v547
        %v676 = vmul.f32 %v548, %v548
        %v677 = vmul.f32 %v549, %v549
        %v678 = vmul.f32 %v550, %v550
        %v679 = vmul.f32 %v551, %v551
        %v680 = vmul.f32 %v552, %v552
        %v681 = vmul.f32 %v553, %v553
        %v682 = vmul.f32 %v554, %v554
        %v683 = vmul.f32 %v555, %v555
        %v684 = vmul.f32 %v556, %v556
        %v685 = vmul.f32 %v557, %v557
        %v686 = vmul.f32 %v558, %v558
        %v687 = vmul.f32 %v559, %v559
        %v688 = vmul.f32 %v560, %v560
        %v689 = vmul.f32 %v561, %v561
        %v690 = vmul.f32 %v562, %v562
        %v691 = vmul.f32 %v563, %v563
        %v692 = vmul.f32 %v564, %v564
        %v693 = vmul.f32 %v565, %v565
        %v694 = vmul.f32 %v566, %v566
        %v695 = vmul.f32 %v567, %v567
        %v696 = vmul.f32 %v568, %v568
        %v697 = vmul.f32 %v569, %v569
        %v698 = vmul.f32 %v570, %v570
        %v699 = vmul.f32 %v571, %v571
        %v700 = vmul.f32 %v572, %v572
        %v701 = vmul.f32 %v573, %v573
        %v702 = vmul.f32 %v574, %v574
        %v703 = vmul.f32 %v575, %v575
        %v704 = vadd.f32 %v576, %v577
        %v705 = vadd.f32 %v704, %v578
        %v706 = vadd.f32 %v705, %v579
        %707 = vadd.xlane.f32.xlu0 %v706
        %v708 = vpop.xlane.xlu0 %707
        %v709 = vadd.f32 %v580, %v581
        %v710 = vadd.f32 %v709, %v582
        %v711 = vadd.f32 %v710, %v583
        %712 = vadd.xlane.f32.xlu0 %v711
        %v713 = vpop.xlane.xlu0 %712
        %v714 = vadd.f32 %v584, %v585
        %v715 = vadd.f32 %v714, %v586
        %v716 = vadd.f32 %v715, %v587
        %717 = vadd.xlane.f32.xlu0 %v716
        %v718 = vpop.xlane.xlu0 %717
        %v719 = vadd.f32 %v588, %v589
        %v720 = vadd.f32 %v719, %v590
        %v721 = vadd.f32 %v720, %v591
        %722 = vadd.xlane.f32.xlu0 %v721
        %v723 = vpop.xlane.xlu0 %722
        %v724 = vadd.f32 %v592, %v593
        %v725 = vadd.f32 %v724, %v594
        %v726 = vadd.f32 %v725, %v595
        %727 = vadd.xlane.f32.xlu0 %v726
        %v728 = vpop.xlane.xlu0 %727
        %v729 = vadd.f32 %v596, %v597
        %v730 = vadd.f32 %v729, %v598
        %v731 = vadd.f32 %v730, %v599
        %732 = vadd.xlane.f32.xlu0 %v731
        %v733 = vpop.xlane.xlu0 %732
        %v734 = vadd.f32 %v600, %v601
        %v735 = vadd.f32 %v734, %v602
        %v736 = vadd.f32 %v735, %v603
        %737 = vadd.xlane.f32.xlu0 %v736
        %v738 = vpop.xlane.xlu0 %737
        %v739 = vadd.f32 %v604, %v605
        %v740 = vadd.f32 %v739, %v606
        %v741 = vadd.f32 %v740, %v607
        %742 = vadd.xlane.f32.xlu0 %v741
        %v743 = vpop.xlane.xlu0 %742
        %v744 = vadd.f32 %v608, %v609
        %v745 = vadd.f32 %v744, %v610
        %v746 = vadd.f32 %v745, %v611
        %747 = vadd.xlane.f32.xlu0 %v746
        %v748 = vpop.xlane.xlu0 %747
        %v749 = vadd.f32 %v612, %v613
        %v750 = vadd.f32 %v749, %v614
        %v751 = vadd.f32 %v750, %v615
        %752 = vadd.xlane.f32.xlu0 %v751
        %v753 = vpop.xlane.xlu0 %752
        %v754 = vadd.f32 %v616, %v617
        %v755 = vadd.f32 %v754, %v618
        %v756 = vadd.f32 %v755, %v619
        %757 = vadd.xlane.f32.xlu0 %v756
        %v758 = vpop.xlane.xlu0 %757
        %v759 = vadd.f32 %v620, %v621
        %v760 = vadd.f32 %v759, %v622
        %v761 = vadd.f32 %v760, %v623
        %762 = vadd.xlane.f32.xlu0 %v761
        %v763 = vpop.xlane.xlu0 %762
        %v764 = vadd.f32 %v624, %v625
        %v765 = vadd.f32 %v764, %v626
        %v766 = vadd.f32 %v765, %v627
        %767 = vadd.xlane.f32.xlu0 %v766
        %v768 = vpop.xlane.xlu0 %767
        %v769 = vadd.f32 %v628, %v629
        %v770 = vadd.f32 %v769, %v630
        %v771 = vadd.f32 %v770, %v631
        %772 = vadd.xlane.f32.xlu0 %v771
        %v773 = vpop.xlane.xlu0 %772
        %v774 = vadd.f32 %v632, %v633
        %v775 = vadd.f32 %v774, %v634
        %v776 = vadd.f32 %v775, %v635
        %777 = vadd.xlane.f32.xlu0 %v776
        %v778 = vpop.xlane.xlu0 %777
        %v779 = vadd.f32 %v636, %v637
        %v780 = vadd.f32 %v779, %v638
        %v781 = vadd.f32 %v780, %v639
        %782 = vadd.xlane.f32.xlu0 %v781
        %v783 = vpop.xlane.xlu0 %782
        %v784 = vadd.f32 %v640, %v641
        %v785 = vadd.f32 %v784, %v642
        %v786 = vadd.f32 %v785, %v643
        %787 = vadd.xlane.f32.xlu0 %v786
        %v788 = vpop.xlane.xlu0 %787
        %v789 = vadd.f32 %v644, %v645
        %v790 = vadd.f32 %v789, %v646
        %v791 = vadd.f32 %v790, %v647
        %792 = vadd.xlane.f32.xlu0 %v791
        %v793 = vpop.xlane.xlu0 %792
        %v794 = vadd.f32 %v648, %v649
        %v795 = vadd.f32 %v794, %v650
        %v796 = vadd.f32 %v795, %v651
        %797 = vadd.xlane.f32.xlu0 %v796
        %v798 = vpop.xlane.xlu0 %797
        %v799 = vadd.f32 %v652, %v653
        %v800 = vadd.f32 %v799, %v654
        %v801 = vadd.f32 %v800, %v655
        %802 = vadd.xlane.f32.xlu0 %v801
        %v803 = vpop.xlane.xlu0 %802
        %v804 = vadd.f32 %v656, %v657
        %v805 = vadd.f32 %v804, %v658
        %v806 = vadd.f32 %v805, %v659
        %807 = vadd.xlane.f32.xlu0 %v806
        %v808 = vpop.xlane.xlu0 %807
        %v809 = vadd.f32 %v660, %v661
        %v810 = vadd.f32 %v809, %v662
        %v811 = vadd.f32 %v810, %v663
        %812 = vadd.xlane.f32.xlu0 %v811
        %v813 = vpop.xlane.xlu0 %812
        %v814 = vadd.f32 %v664, %v665
        %v815 = vadd.f32 %v814, %v666
        %v816 = vadd.f32 %v815, %v667
        %817 = vadd.xlane.f32.xlu0 %v816
        %v818 = vpop.xlane.xlu0 %817
        %v819 = vadd.f32 %v668, %v669
        %v820 = vadd.f32 %v819, %v670
        %v821 = vadd.f32 %v820, %v671
        %822 = vadd.xlane.f32.xlu0 %v821
        %v823 = vpop.xlane.xlu0 %822
        %v824 = vadd.f32 %v672, %v673
        %v825 = vadd.f32 %v824, %v674
        %v826 = vadd.f32 %v825, %v675
        %827 = vadd.xlane.f32.xlu0 %v826
        %v828 = vpop.xlane.xlu0 %827
        %v829 = vadd.f32 %v676, %v677
        %v830 = vadd.f32 %v829, %v678
        %v831 = vadd.f32 %v830, %v679
        %832 = vadd.xlane.f32.xlu0 %v831
        %v833 = vpop.xlane.xlu0 %832
        %v834 = vadd.f32 %v680, %v681
        %v835 = vadd.f32 %v834, %v682
        %v836 = vadd.f32 %v835, %v683
        %837 = vadd.xlane.f32.xlu0 %v836
        %v838 = vpop.xlane.xlu0 %837
        %v839 = vadd.f32 %v684, %v685
        %v840 = vadd.f32 %v839, %v686
        %v841 = vadd.f32 %v840, %v687
        %842 = vadd.xlane.f32.xlu0 %v841
        %v843 = vpop.xlane.xlu0 %842
        %v844 = vadd.f32 %v688, %v689
        %v845 = vadd.f32 %v844, %v690
        %v846 = vadd.f32 %v845, %v691
        %847 = vadd.xlane.f32.xlu0 %v846
        %v848 = vpop.xlane.xlu0 %847
        %v849 = vadd.f32 %v692, %v693
        %v850 = vadd.f32 %v849, %v694
        %v851 = vadd.f32 %v850, %v695
        %852 = vadd.xlane.f32.xlu0 %v851
        %v853 = vpop.xlane.xlu0 %852
        %v854 = vadd.f32 %v696, %v697
        %v855 = vadd.f32 %v854, %v698
        %v856 = vadd.f32 %v855, %v699
        %857 = vadd.xlane.f32.xlu0 %v856
        %v858 = vpop.xlane.xlu0 %857
        %v859 = vadd.f32 %v700, %v701
        %v860 = vadd.f32 %v859, %v702
        %v861 = vadd.f32 %v860, %v703
        %862 = vadd.xlane.f32.xlu0 %v861
        %v863 = vpop.xlane.xlu0 %862
        %v864 = vmax.f32 %v708, 1e-24
        %v865 = vmax.f32 %v713, 1e-24
        %v866 = vmax.f32 %v718, 1e-24
        %v867 = vmax.f32 %v723, 1e-24
        %v868 = vmax.f32 %v728, 1e-24
        %v869 = vmax.f32 %v733, 1e-24
        %v870 = vmax.f32 %v738, 1e-24
        %v871 = vmax.f32 %v743, 1e-24
        %v872 = vmax.f32 %v748, 1e-24
        %v873 = vmax.f32 %v753, 1e-24
        %v874 = vmax.f32 %v758, 1e-24
        %v875 = vmax.f32 %v763, 1e-24
        %v876 = vmax.f32 %v768, 1e-24
        %v877 = vmax.f32 %v773, 1e-24
        %v878 = vmax.f32 %v778, 1e-24
        %v879 = vmax.f32 %v783, 1e-24
        %v880 = vmax.f32 %v788, 1e-24
        %v881 = vmax.f32 %v793, 1e-24
        %v882 = vmax.f32 %v798, 1e-24
        %v883 = vmax.f32 %v803, 1e-24
        %v884 = vmax.f32 %v808, 1e-24
        %v885 = vmax.f32 %v813, 1e-24
        %v886 = vmax.f32 %v818, 1e-24
        %v887 = vmax.f32 %v823, 1e-24
        %v888 = vmax.f32 %v828, 1e-24
        %v889 = vmax.f32 %v833, 1e-24
        %v890 = vmax.f32 %v838, 1e-24
        %v891 = vmax.f32 %v843, 1e-24
        %v892 = vmax.f32 %v848, 1e-24
        %v893 = vmax.f32 %v853, 1e-24
        %v894 = vmax.f32 %v858, 1e-24
        %v895 = vmax.f32 %v863, 1e-24
        %v896 = vrsqrt.pop %v864
        %v897 = vrsqrt.pop %v865
        %v898 = vrsqrt.pop %v866
        %v899 = vrsqrt.pop %v867
        %v900 = vrsqrt.pop %v868
        %v901 = vrsqrt.pop %v869
        %v902 = vrsqrt.pop %v870
        %v903 = vrsqrt.pop %v871
        %v904 = vrsqrt.pop %v872
        %v905 = vrsqrt.pop %v873
        %v906 = vrsqrt.pop %v874
        %v907 = vrsqrt.pop %v875
        %v908 = vrsqrt.pop %v876
        %v909 = vrsqrt.pop %v877
        %v910 = vrsqrt.pop %v878
        %v911 = vrsqrt.pop %v879
        %v912 = vrsqrt.pop %v880
        %v913 = vrsqrt.pop %v881
        %v914 = vrsqrt.pop %v882
        %v915 = vrsqrt.pop %v883
        %v916 = vrsqrt.pop %v884
        %v917 = vrsqrt.pop %v885
        %v918 = vrsqrt.pop %v886
        %v919 = vrsqrt.pop %v887
        %v920 = vrsqrt.pop %v888
        %v921 = vrsqrt.pop %v889
        %v922 = vrsqrt.pop %v890
        %v923 = vrsqrt.pop %v891
        %v924 = vrsqrt.pop %v892
        %v925 = vrsqrt.pop %v893
        %v926 = vrsqrt.pop %v894
        %v927 = vrsqrt.pop %v895
        %v928 = vmul.f32 %v448, %v896
        %v929 = vmul.f32 %v449, %v896
        %v930 = vmul.f32 %v450, %v896
        %v931 = vmul.f32 %v451, %v896
        %v932 = vmul.f32 %v452, %v897
        %v933 = vmul.f32 %v453, %v897
        %v934 = vmul.f32 %v454, %v897
        %v935 = vmul.f32 %v455, %v897
        %v936 = vmul.f32 %v456, %v898
        %v937 = vmul.f32 %v457, %v898
        %v938 = vmul.f32 %v458, %v898
        %v939 = vmul.f32 %v459, %v898
        %v940 = vmul.f32 %v460, %v899
        %v941 = vmul.f32 %v461, %v899
        %v942 = vmul.f32 %v462, %v899
        %v943 = vmul.f32 %v463, %v899
        %v944 = vmul.f32 %v464, %v900
        %v945 = vmul.f32 %v465, %v900
        %v946 = vmul.f32 %v466, %v900
        %v947 = vmul.f32 %v467, %v900
        %v948 = vmul.f32 %v468, %v901
        %v949 = vmul.f32 %v469, %v901
        %v950 = vmul.f32 %v470, %v901
        %v951 = vmul.f32 %v471, %v901
        %v952 = vmul.f32 %v472, %v902
        %v953 = vmul.f32 %v473, %v902
        %v954 = vmul.f32 %v474, %v902
        %v955 = vmul.f32 %v475, %v902
        %v956 = vmul.f32 %v476, %v903
        %v957 = vmul.f32 %v477, %v903
        %v958 = vmul.f32 %v478, %v903
        %v959 = vmul.f32 %v479, %v903
        %v960 = vmul.f32 %v480, %v904
        %v961 = vmul.f32 %v481, %v904
        %v962 = vmul.f32 %v482, %v904
        %v963 = vmul.f32 %v483, %v904
        %v964 = vmul.f32 %v484, %v905
        %v965 = vmul.f32 %v485, %v905
        %v966 = vmul.f32 %v486, %v905
        %v967 = vmul.f32 %v487, %v905
        %v968 = vmul.f32 %v488, %v906
        %v969 = vmul.f32 %v489, %v906
        %v970 = vmul.f32 %v490, %v906
        %v971 = vmul.f32 %v491, %v906
        %v972 = vmul.f32 %v492, %v907
        %v973 = vmul.f32 %v493, %v907
        %v974 = vmul.f32 %v494, %v907
        %v975 = vmul.f32 %v495, %v907
        %v976 = vmul.f32 %v496, %v908
        %v977 = vmul.f32 %v497, %v908
        %v978 = vmul.f32 %v498, %v908
        %v979 = vmul.f32 %v499, %v908
        %v980 = vmul.f32 %v500, %v909
        %v981 = vmul.f32 %v501, %v909
        %v982 = vmul.f32 %v502, %v909
        %v983 = vmul.f32 %v503, %v909
        %v984 = vmul.f32 %v504, %v910
        %v985 = vmul.f32 %v505, %v910
        %v986 = vmul.f32 %v506, %v910
        %v987 = vmul.f32 %v507, %v910
        %v988 = vmul.f32 %v508, %v911
        %v989 = vmul.f32 %v509, %v911
        %v990 = vmul.f32 %v510, %v911
        %v991 = vmul.f32 %v511, %v911
        %v992 = vmul.f32 %v512, %v912
        %v993 = vmul.f32 %v513, %v912
        %v994 = vmul.f32 %v514, %v912
        %v995 = vmul.f32 %v515, %v912
        %v996 = vmul.f32 %v516, %v913
        %v997 = vmul.f32 %v517, %v913
        %v998 = vmul.f32 %v518, %v913
        %v999 = vmul.f32 %v519, %v913
        %v1000 = vmul.f32 %v520, %v914
        %v1001 = vmul.f32 %v521, %v914
        %v1002 = vmul.f32 %v522, %v914
        %v1003 = vmul.f32 %v523, %v914
        %v1004 = vmul.f32 %v524, %v915
        %v1005 = vmul.f32 %v525, %v915
        %v1006 = vmul.f32 %v526, %v915
        %v1007 = vmul.f32 %v527, %v915
        %v1008 = vmul.f32 %v528, %v916
        %v1009 = vmul.f32 %v529, %v916
        %v1010 = vmul.f32 %v530, %v916
        %v1011 = vmul.f32 %v531, %v916
        %v1012 = vmul.f32 %v532, %v917
        %v1013 = vmul.f32 %v533, %v917
        %v1014 = vmul.f32 %v534, %v917
        %v1015 = vmul.f32 %v535, %v917
        %v1016 = vmul.f32 %v536, %v918
        %v1017 = vmul.f32 %v537, %v918
        %v1018 = vmul.f32 %v538, %v918
        %v1019 = vmul.f32 %v539, %v918
        %v1020 = vmul.f32 %v540, %v919
        %v1021 = vmul.f32 %v541, %v919
        %v1022 = vmul.f32 %v542, %v919
        %v1023 = vmul.f32 %v543, %v919
        %v1024 = vmul.f32 %v544, %v920
        %v1025 = vmul.f32 %v545, %v920
        %v1026 = vmul.f32 %v546, %v920
        %v1027 = vmul.f32 %v547, %v920
        %v1028 = vmul.f32 %v548, %v921
        %v1029 = vmul.f32 %v549, %v921
        %v1030 = vmul.f32 %v550, %v921
        %v1031 = vmul.f32 %v551, %v921
        %v1032 = vmul.f32 %v552, %v922
        %v1033 = vmul.f32 %v553, %v922
        %v1034 = vmul.f32 %v554, %v922
        %v1035 = vmul.f32 %v555, %v922
        %v1036 = vmul.f32 %v556, %v923
        %v1037 = vmul.f32 %v557, %v923
        %v1038 = vmul.f32 %v558, %v923
        %v1039 = vmul.f32 %v559, %v923
        %v1040 = vmul.f32 %v560, %v924
        %v1041 = vmul.f32 %v561, %v924
        %v1042 = vmul.f32 %v562, %v924
        %v1043 = vmul.f32 %v563, %v924
        %v1044 = vmul.f32 %v564, %v925
        %v1045 = vmul.f32 %v565, %v925
        %v1046 = vmul.f32 %v566, %v925
        %v1047 = vmul.f32 %v567, %v925
        %v1048 = vmul.f32 %v568, %v926
        %v1049 = vmul.f32 %v569, %v926
        %v1050 = vmul.f32 %v570, %v926
        %v1051 = vmul.f32 %v571, %v926
        %v1052 = vmul.f32 %v572, %v927
        %v1053 = vmul.f32 %v573, %v927
        %v1054 = vmul.f32 %v574, %v927
        %v1055 = vmul.f32 %v575, %v927
        %v1056 = vld [vmem:[%s204] sm:$0xff]
        %v1057 = vld [vmem:[%s204 + $0x8] sm:$0xff]
        %v1058 = vld [vmem:[%s204 + $0x10] sm:$0xff]
        %v1059 = vld [vmem:[%s204 + $0x18] sm:$0xff]
        %1060 = vmatprep.subr.mxu0 %v929
        %1061 = vmatpush1.xpose.msra.mxu0 %v928
        %1062 = vmatprep.subr.mxu0 %v933
        %1063 = vmatpush1.xpose.msra.mxu0 %v932
        %1064 = vmatprep.subr.mxu0 %v937
        %1065 = vmatpush1.xpose.msra.mxu0 %v936
        %1066 = vmatprep.subr.mxu0 %v941
        %1067 = vmatpush1.xpose.msra.mxu0 %v940
        %1068 = vmatprep.subr.mxu0 %v945
        %1069 = vmatpush1.xpose.msra.mxu0 %v944
        %1070 = vmatprep.subr.mxu0 %v949
        %1071 = vmatpush1.xpose.msra.mxu0 %v948
        %1072 = vmatprep.subr.mxu0 %v953
        %1073 = vmatpush1.xpose.msra.mxu0 %v952
        %1074 = vmatprep.subr.mxu0 %v957
        %1075 = vmatpush1.xpose.msra.mxu0 %v956
        %1076 = vmatprep.subr.mxu0 %v961
        %1077 = vmatpush1.xpose.msra.mxu0 %v960
        %1078 = vmatprep.subr.mxu0 %v965
        %1079 = vmatpush1.xpose.msra.mxu0 %v964
        %1080 = vmatprep.subr.mxu0 %v969
        %1081 = vmatpush1.xpose.msra.mxu0 %v968
        %1082 = vmatprep.subr.mxu0 %v973
        %1083 = vmatpush1.xpose.msra.mxu0 %v972
        %1084 = vmatprep.subr.mxu0 %v977
        %1085 = vmatpush1.xpose.msra.mxu0 %v976
        %1086 = vmatprep.subr.mxu0 %v981
        %1087 = vmatpush1.xpose.msra.mxu0 %v980
        %1088 = vmatprep.subr.mxu0 %v985
        %1089 = vmatpush1.xpose.msra.mxu0 %v984
        %1090 = vmatprep.subr.mxu0 %v989
        %1091 = vmatpush1.xpose.msra.mxu0 %v988
        %1092 = vmatprep.subr.mxu0 %v993
        %1093 = vmatpush1.xpose.msra.mxu0 %v992
        %1094 = vmatprep.subr.mxu0 %v997
        %1095 = vmatpush1.xpose.msra.mxu0 %v996
        %1096 = vmatprep.subr.mxu0 %v1001
        %1097 = vmatpush1.xpose.msra.mxu0 %v1000
        %1098 = vmatprep.subr.mxu0 %v1005
        %1099 = vmatpush1.xpose.msra.mxu0 %v1004
        %1100 = vmatprep.subr.mxu0 %v1009
        %1101 = vmatpush1.xpose.msra.mxu0 %v1008
        %1102 = vmatprep.subr.mxu0 %v1013
        %1103 = vmatpush1.xpose.msra.mxu0 %v1012
        %1104 = vmatprep.subr.mxu0 %v1017
        %1105 = vmatpush1.xpose.msra.mxu0 %v1016
        %1106 = vmatprep.subr.mxu0 %v1021
        %1107 = vmatpush1.xpose.msra.mxu0 %v1020
        %1108 = vmatprep.subr.mxu0 %v1025
        %1109 = vmatpush1.xpose.msra.mxu0 %v1024
        %1110 = vmatprep.subr.mxu0 %v1029
        %1111 = vmatpush1.xpose.msra.mxu0 %v1028
        %1112 = vmatprep.subr.mxu0 %v1033
        %1113 = vmatpush1.xpose.msra.mxu0 %v1032
        %1114 = vmatprep.subr.mxu0 %v1037
        %1115 = vmatpush1.xpose.msra.mxu0 %v1036
        %1116 = vmatprep.subr.mxu0 %v1041
        %1117 = vmatpush1.xpose.msra.mxu0 %v1040
        %1118 = vmatprep.subr.mxu0 %v1045
        %1119 = vmatpush1.xpose.msra.mxu0 %v1044
        %1120 = vmatprep.subr.mxu0 %v1049
        %1121 = vmatpush1.xpose.msra.mxu0 %v1048
        %1122 = vmatprep.subr.mxu0 %v1053
        %1123 = vmatpush1.xpose.msra.mxu0 %v1052
        %1124 = vmatprep.mubr.f32.mxu0 %v1057
        %1125 = vmatmul.mubr.f32.gmra.mrb[0].mxu0 %v1056
        %v1126 = vpop.f32.mrb[0].mxu0
        %v1127 = vadd.f32 0.0, %v1126
        %v1128 = vpop.f32.mrb[0].mxu0
        %v1129 = vadd.f32 0.0, %v1128
        %1130 = vdwg.mxu0
        %1131 = vmatprep.subr.mxu0 %v931
        %1132 = vmatpush1.xpose.msra.mxu0 %v930
        %1133 = vmatprep.subr.mxu0 %v935
        %1134 = vmatpush1.xpose.msra.mxu0 %v934
        %1135 = vmatprep.subr.mxu0 %v939
        %1136 = vmatpush1.xpose.msra.mxu0 %v938
        %1137 = vmatprep.subr.mxu0 %v943
        %1138 = vmatpush1.xpose.msra.mxu0 %v942
        %1139 = vmatprep.subr.mxu0 %v947
        %1140 = vmatpush1.xpose.msra.mxu0 %v946
        %1141 = vmatprep.subr.mxu0 %v951
        %1142 = vmatpush1.xpose.msra.mxu0 %v950
        %1143 = vmatprep.subr.mxu0 %v955
        %1144 = vmatpush1.xpose.msra.mxu0 %v954
        %1145 = vmatprep.subr.mxu0 %v959
        %1146 = vmatpush1.xpose.msra.mxu0 %v958
        %1147 = vmatprep.subr.mxu0 %v963
        %1148 = vmatpush1.xpose.msra.mxu0 %v962
        %1149 = vmatprep.subr.mxu0 %v967
        %1150 = vmatpush1.xpose.msra.mxu0 %v966
        %1151 = vmatprep.subr.mxu0 %v971
        %1152 = vmatpush1.xpose.msra.mxu0 %v970
        %1153 = vmatprep.subr.mxu0 %v975
        %1154 = vmatpush1.xpose.msra.mxu0 %v974
        %1155 = vmatprep.subr.mxu0 %v979
        %1156 = vmatpush1.xpose.msra.mxu0 %v978
        %1157 = vmatprep.subr.mxu0 %v983
        %1158 = vmatpush1.xpose.msra.mxu0 %v982
        %1159 = vmatprep.subr.mxu0 %v987
        %1160 = vmatpush1.xpose.msra.mxu0 %v986
        %1161 = vmatprep.subr.mxu0 %v991
        %1162 = vmatpush1.xpose.msra.mxu0 %v990
        %1163 = vmatprep.subr.mxu0 %v995
        %1164 = vmatpush1.xpose.msra.mxu0 %v994
        %1165 = vmatprep.subr.mxu0 %v999
        %1166 = vmatpush1.xpose.msra.mxu0 %v998
        %1167 = vmatprep.subr.mxu0 %v1003
        %1168 = vmatpush1.xpose.msra.mxu0 %v1002
        %1169 = vmatprep.subr.mxu0 %v1007
        %1170 = vmatpush1.xpose.msra.mxu0 %v1006
        %1171 = vmatprep.subr.mxu0 %v1011
        %1172 = vmatpush1.xpose.msra.mxu0 %v1010
        %1173 = vmatprep.subr.mxu0 %v1015
        %1174 = vmatpush1.xpose.msra.mxu0 %v1014
        %1175 = vmatprep.subr.mxu0 %v1019
        %1176 = vmatpush1.xpose.msra.mxu0 %v1018
        %1177 = vmatprep.subr.mxu0 %v1023
        %1178 = vmatpush1.xpose.msra.mxu0 %v1022
        %1179 = vmatprep.subr.mxu0 %v1027
        %1180 = vmatpush1.xpose.msra.mxu0 %v1026
        %1181 = vmatprep.subr.mxu0 %v1031
        %1182 = vmatpush1.xpose.msra.mxu0 %v1030
        %1183 = vmatprep.subr.mxu0 %v1035
        %1184 = vmatpush1.xpose.msra.mxu0 %v1034
        %1185 = vmatprep.subr.mxu0 %v1039
        %1186 = vmatpush1.xpose.msra.mxu0 %v1038
        %1187 = vmatprep.subr.mxu0 %v1043
        %1188 = vmatpush1.xpose.msra.mxu0 %v1042
        %1189 = vmatprep.subr.mxu0 %v1047
        %1190 = vmatpush1.xpose.msra.mxu0 %v1046
        %1191 = vmatprep.subr.mxu0 %v1051
        %1192 = vmatpush1.xpose.msra.mxu0 %v1050
        %1193 = vmatprep.subr.mxu0 %v1055
        %1194 = vmatpush1.xpose.msra.mxu0 %v1054
        %1195 = vmatprep.mubr.f32.mxu0 %v1059
        %1196 = vmatmul.mubr.f32.gmra.mrb[0].mxu0 %v1058
        %v1197 = vpop.f32.mrb[0].mxu0
        %v1198 = vadd.f32 %v1127, %v1197
        %v1199 = vpop.f32.mrb[0].mxu0
        %v1200 = vadd.f32 %v1129, %v1199
        %1201 = vdwg.mxu0
        %v1202 = vmax.f32 %v1198, -1.0
        %v1203 = vmax.f32 %v1200, -1.0
        %v1204 = vmin.f32 %v1202, 1.0
        %v1205 = vmin.f32 %v1203, 1.0
        %1206 = vst [vmem:[%s219] sm:$0xff] %v1204
        %1207 = vst [vmem:[%s219 + $0x8] sm:$0xff] %v1205
        %s1208 = smul.u32 2, %s20
        %p1209 = scmp.lt.s32.totalorder %s21, 0
        %s1210 = scalar_select %p1209, %s21, 0
        %p1211 = scmp.lt.s32.totalorder %s1208, 3
        %s1212 = scalar_select %p1211, %s1208, 3
        %s1213 = smul.addr %s1210, 4
        %s1214 = sadd.s32 %s1212, %s1213
        %s1215 = smul.addr %s1214, 8
        %s1216 = scalar_lea.vmem %s2, %s1215
        // Predicated region
        $region33: #{face_recog_fc.1} parent=27 // pred_check
          %p1217 = pneg %p100
        $region34: #{face_recog_fc.1} parent=27 // pred_check_branch
          %1219 = sbr.rel (%p1217) target = $region36
        $region35: #{face_recog_fc.1} parent=27 // pred_region
          %s1220 = smul.u32 2, %s20
        $region36: #{face_recog_fc.1} parent=27 // pred_fallthru
          _
      $region28: #{face_recog_fc.1} parent=5 // pred_fallthru
        _
      %p1221 = scmp.le.s32.totalorder 2, %s11
      // Predicated region
      $region37: #{face_recog_fc.1} parent=5 // pred_check
        %p1222 = pneg %p1221
      $region38: #{face_recog_fc.1} parent=5 // pred_check_branch
        %1224 = sbr.rel (%p1222) target = $region40
      $region39: #{face_recog_fc.1} parent=5 // pred_region
        %s1225 = ssub.s32 %s11, 2
        // Predicated region
        $region41: #{face_recog_fc.1} parent=39 // pred_check
          %p1226 = pneg %p106
        $region42: #{face_recog_fc.1} parent=39 // pred_check_branch
          %1228 = sbr.rel (%p1226) target = $region44
        $region43: #{face_recog_fc.1} parent=39 // pred_region
          %s1229 = smul.u32 2, %s22
          %p1230 = scmp.lt.s32.totalorder %s23, 0
          %s1231 = scalar_select %p1230, %s23, 0
          %p1232 = scmp.lt.s32.totalorder %s1229, 3
          %s1233 = scalar_select %p1232, %s1229, 3
          %s1234 = smul.addr %s1231, 4
          %s1235 = sadd.s32 %s1233, %s1234
          %s1236 = smul.addr %s1235, 8
          %s1237 = scalar_lea.vmem %s2, %s1236
        $region44: #{face_recog_fc.1} parent=39 // pred_fallthru
          _
      $region40: #{face_recog_fc.1} parent=5 // pred_fallthru
        _
    $region6: #{face_recog_fc.1} parent=1 // loop_footer
      %s15 = sadd.s32 1, %s11
    $region7: #{face_recog_fc.1} parent=1 // loop_footer_branch
      %10 = sbr.rel target = $region3
    $region8: #{face_recog_fc.1} parent=1 // loop_exit
      _
    %1238 = vsyncpa [#allocation3], 1
    %s1239 = scalar_lea.sflag [#allocation3], 1
    %1240 = vsyncpa %s1239, 1

</llo_original>
